<compile_context>
chip_gen: v7x
topology: tpu7x:2x2x1
jax: 0.10.0
libtpu: 0.0.40
codegen_flags: <defaults>
</compile_context>

<pallas_src>
import math
import jax
import jax.numpy as jnp
from jax.experimental import pallas as pl
from jax.experimental.pallas import tpu as pltpu


HIDDEN = 256
MAX_TILE_B = 2048      # rows per grid step (bf16 hidden ~1 KB/row -> well inside VMEM)
OUT_ROWS = 8           # logp | value | entropy | 5 pad rows (sublane-aligned output slab)
VMEM_LIMIT_BYTES = 64 * 1024 * 1024


def _softplus(x):
    # numerically stable softplus(x) = max(x, 0) + log1p(exp(-|x|))
    return jnp.maximum(x, 0.0) + jnp.log1p(jnp.exp(-jnp.abs(x)))


def actor_critic_eval_kernel(state_ref, action_ref,
                             w1_ref, b1_ref,      # fused layer-1: [S, 2H] bf16, [1, 2H] f32
                             w2_ref, b2_ref,      # fused head:    [2H, 2A+1] bf16, [1, 2A+1] f32
                             out_ref):            # packed lane-dense output: [8, TB]
    a = action_ref[...]                           # [TB, A] f32
    A = a.shape[-1]
    tb = a.shape[0]

    # ---- fused layer 1 (actor || critic): bf16 MXU operands, f32 accumulation ----
    x = state_ref[...].astype(jnp.bfloat16)       # cheap VPU cast, hidden under MXU
    pre = jnp.dot(x, w1_ref[...], preferred_element_type=jnp.float32) + b1_ref[...]
    # tanh in f32 (portable to v5e's f32-only EUP/VPU), cast straight to bf16
    # so the head matmul gets native bf16 operands with no extra f32 temp.
    hh = jnp.tanh(pre).astype(jnp.bfloat16)       # [TB, 2H]

    # ---- fused block-diagonal head: mean | raw_var | value in one matmul ----
    head = jnp.dot(hh, w2_ref[...], preferred_element_type=jnp.float32) + b2_ref[...]  # [TB, 2A+1] f32
    mean = head[:, :A]
    raw_var = head[:, A:2 * A]
    value = head[:, 2 * A:2 * A + 1]

    var = _softplus(raw_var)
    log_var = jnp.log(var)
    inv_var = pl.reciprocal(var, approx=False)    # exact; A~8 elems/row, negligible cost

    # ---- diagonal MultivariateNormal log_prob / entropy ----
    log2pi = jnp.float32(math.log(2.0 * math.pi))
    diff = a - mean
    quad = jnp.sum(diff * diff * inv_var, axis=-1, keepdims=True)   # [TB, 1]
    sld = jnp.sum(log_var, axis=-1, keepdims=True)                  # [TB, 1]  (= log|Sigma|)

    logp = -0.5 * (quad + sld + A * log2pi)                         # [TB, 1]
    ent = 0.5 * (A * (1.0 + log2pi)) + 0.5 * sld                    # [TB, 1]

    # ---- lane-dense packed store: [TB, 8] -> [8, TB] (relayout on idle XLU) ----
    pad = jnp.zeros((tb, OUT_ROWS - 3), jnp.float32)
    packed = jnp.concatenate([logp, value, ent, pad], axis=-1)      # [TB, 8]
    out_ref[...] = jnp.transpose(packed)                            # [8, TB], unmasked stores


def pack_params(params, action_dim, hidden=HIDDEN):
    """Fuse actor/critic layer-1 weights and build the block-diagonal head.

    Weights are packed as bf16 (native MXU dtype); biases stay f32 and are
    added to the f32 accumulators.
    """
    w1f = jnp.concatenate([params["w1"], params["wc1"]], axis=1).astype(jnp.bfloat16)  # [S, 2H]
    b1f = jnp.concatenate([params["b1"], params["bc1"]], axis=1).astype(jnp.float32)   # [1, 2H]
    nh = 2 * action_dim + 1
    w2f = jnp.zeros((2 * hidden, nh), jnp.float32)
    w2f = w2f.at[:hidden, :2 * action_dim].set(params["w2"])        # actor head
    w2f = w2f.at[hidden:, 2 * action_dim:].set(params["wc2"])       # critic head
    w2f = w2f.astype(jnp.bfloat16)                                  # [2H, 2A+1]
    b2f = jnp.concatenate([params["b2"], params["bc2"]], axis=1).astype(jnp.float32)   # [1, 2A+1]
    return w1f, b1f, w2f, b2f


def _choose_tile_b(B):
    """Pick the batch tile.

    - Large batches: 2048-row tiles (multiple of 128 -> lane-dense output blocks).
    - Mid-sized batches that fit one tile: split into 2 grid steps when the
      halves stay 128-lane aligned, so v7x's two TensorCores both get work.
    - Otherwise: whole batch in one step (block shape == full array dims).
    """
    if B > MAX_TILE_B:
        return MAX_TILE_B
    if B >= 512 and B % 256 == 0:
        return B // 2
    return B


def actor_critic_evaluate(state, action, params, hidden=HIDDEN):
    """Returns (action_logprobs [B], state_value [B], dist_entropy [B])."""
    B, S = state.shape
    A = action.shape[-1]
    w1f, b1f, w2f, b2f = pack_params(params, A, hidden)

    tile_b = _choose_tile_b(B)
    grid = (pl.cdiv(B, tile_b),)

    def resident(shp):
        # Weights/biases stay VMEM-resident across grid steps.
        return pl.BlockSpec(shp, lambda i: (0, 0))

    out = pl.pallas_call(
        actor_critic_eval_kernel,
        out_shape=jax.ShapeDtypeStruct((OUT_ROWS, B), jnp.float32),
        grid=grid,
        in_specs=[
            pl.BlockSpec((tile_b, S), lambda i: (i, 0)),   # state
            pl.BlockSpec((tile_b, A), lambda i: (i, 0)),   # action
            resident(w1f.shape), resident(b1f.shape),
            resident(w2f.shape), resident(b2f.shape),
        ],
        out_specs=pl.BlockSpec((OUT_ROWS, tile_b), lambda i: (0, i)),
        compiler_params=pltpu.CompilerParams(
            dimension_semantics=("parallel",),
            vmem_limit_bytes=VMEM_LIMIT_BYTES,
        ),
    )(state, action, w1f, b1f, w2f, b2f)

    # torch returns log_prob: [B], squeeze(state_value): [B], entropy: [B]
    # Rows of the lane-dense slab -> cheap contiguous slices.
    return out[0], out[1], out[2]


def init_params(key, state_dim, action_dim, hidden=HIDDEN):
    """Deterministic param init mimicking torch.nn.Linear default (U[-1/sqrt(fan_in), +])."""
    ks = jax.random.split(key, 8)

    def lin(kw, kb, fan_in, fan_out):
        bound = 1.0 / math.sqrt(fan_in)
        w = jax.random.uniform(kw, (fan_in, fan_out), jnp.float32, -bound, bound)
        b = jax.random.uniform(kb, (1, fan_out), jnp.float32, -bound, bound)
        return w, b

    w1, b1 = lin(ks[0], ks[1], state_dim, hidden)
    w2, b2 = lin(ks[2], ks[3], hidden, 2 * action_dim)    # head columns = mean | raw_var
    wc1, bc1 = lin(ks[4], ks[5], state_dim, hidden)
    wc2, bc2 = lin(ks[6], ks[7], hidden, 1)
    return dict(w1=w1, b1=b1, w2=w2, b2=b2, wc1=wc1, bc1=bc1, wc2=wc2, bc2=bc2)


def _reference_evaluate(state, action, params):
    """Pure-JAX f32 reference, identical math, for a correctness sanity check."""
    A = action.shape[-1]
    h = jnp.tanh(state @ params["w1"] + params["b1"])
    head = h @ params["w2"] + params["b2"]
    mean, raw_var = head[:, :A], head[:, A:]
    var = jax.nn.softplus(raw_var)
    log2pi = math.log(2.0 * math.pi)
    diff = action - mean
    logp = -0.5 * (jnp.sum(diff * diff / var, -1) + jnp.sum(jnp.log(var), -1) + A * log2pi)
    ent = 0.5 * A * (1.0 + log2pi) + 0.5 * jnp.sum(jnp.log(var), -1)
    hc = jnp.tanh(state @ params["wc1"] + params["bc1"])
    value = (hc @ params["wc2"] + params["bc2"])[:, 0]
    return logp, value, ent


if __name__ == "__main__":
    B, STATE_DIM, ACTION_DIM = 8, 16, 8

    key = jax.random.PRNGKey(0)
    k_params, k_state, k_action = jax.random.split(key, 3)

    params = init_params(k_params, STATE_DIM, ACTION_DIM)
    state = jax.random.normal(k_state, (B, STATE_DIM), jnp.float32)
    action = jax.random.normal(k_action, (B, ACTION_DIM), jnp.float32)

    logp, value, ent = jax.block_until_ready(
        actor_critic_evaluate(state, action, params)
    )

    logp_ref, value_ref, ent_ref = _reference_evaluate(state, action, params)
    assert logp.shape == (B,) and value.shape == (B,) and ent.shape == (B,)
    # bf16 MXU operands (f32 accumulation) -> relaxed tolerance vs. f32 reference.
    assert jnp.allclose(logp, logp_ref, atol=2e-2, rtol=2e-2)
    assert jnp.allclose(value, value_ref, atol=2e-2, rtol=2e-2)
    assert jnp.allclose(ent, ent_ref, atol=2e-2, rtol=2e-2)

    print("KERNEL_OK")
</pallas_src>

<mosaic_0001>
module attributes {stable_mosaic.version = 11 : i64} {
  func.func @actor_critic_eval_kernel(%arg0: i32, %arg1: memref<8x16xf32, #tpu.memory_space<vmem>>, %arg2: memref<8x8xf32, #tpu.memory_space<vmem>>, %arg3: memref<16x512xbf16, #tpu.memory_space<vmem>>, %arg4: memref<1x512xf32, #tpu.memory_space<vmem>>, %arg5: memref<512x17xbf16, #tpu.memory_space<vmem>>, %arg6: memref<1x17xf32, #tpu.memory_space<vmem>>, %arg7: memref<8x8xf32, #tpu.memory_space<vmem>>) attributes {dimension_semantics = [#tpu.dimension_semantics<parallel>], iteration_bounds = array<i64: 1>, scalar_prefetch = 0 : i64, scratch_operands = 0 : i64, tpu.core_type = #tpu.core_type<tc>, window_params = [{transform_indices = @transform_0, window_bounds = array<i64: 8, 16>}, {transform_indices = @transform_1, window_bounds = array<i64: 8, 8>}, {pipeline_mode = #tpu.pipeline_mode<synchronous>, transform_indices = @transform_2, window_bounds = array<i64: 16, 512>}, {pipeline_mode = #tpu.pipeline_mode<synchronous>, transform_indices = @transform_3, window_bounds = array<i64: 1, 512>}, {pipeline_mode = #tpu.pipeline_mode<synchronous>, transform_indices = @transform_4, window_bounds = array<i64: 512, 17>}, {pipeline_mode = #tpu.pipeline_mode<synchronous>, transform_indices = @transform_5, window_bounds = array<i64: 1, 17>}, {transform_indices = @transform_6, window_bounds = array<i64: 8, 8>}]} {
    %c0 = arith.constant 0 : index
    %c0_0 = arith.constant 0 : index
    %0 = vector.load %arg2[%c0, %c0_0] : memref<8x8xf32, #tpu.memory_space<vmem>>, vector<8x8xf32>
    %c0_1 = arith.constant 0 : index
    %c0_2 = arith.constant 0 : index
    %1 = vector.load %arg1[%c0_1, %c0_2] : memref<8x16xf32, #tpu.memory_space<vmem>>, vector<8x16xf32>
    %2 = arith.truncf %1 : vector<8x16xf32> to vector<8x16xbf16>
    %c0_3 = arith.constant 0 : index
    %c0_4 = arith.constant 0 : index
    %3 = vector.load %arg3[%c0_3, %c0_4] : memref<16x512xbf16, #tpu.memory_space<vmem>>, vector<16x512xbf16>
    %cst = arith.constant dense<0.000000e+00> : vector<8x512xf32>
    %4 = tpu.matmul %2, %3, %cst {dimension_numbers = #tpu.dot_dimension_numbers<[1], [0], [0], [1], [0, 0, 1, 1], [], []>} : vector<8x16xbf16>, vector<16x512xbf16>, vector<8x512xf32> -> vector<8x512xf32>
    %c0_5 = arith.constant 0 : index
    %c0_6 = arith.constant 0 : index
    %5 = vector.load %arg4[%c0_5, %c0_6] : memref<1x512xf32, #tpu.memory_space<vmem>>, vector<1x512xf32>
    %6 = vector.broadcast %5 : vector<1x512xf32> to vector<8x512xf32>
    %7 = arith.addf %4, %6 : vector<8x512xf32>
    %8 = math.tanh %7 : vector<8x512xf32>
    %9 = arith.truncf %8 : vector<8x512xf32> to vector<8x512xbf16>
    %c0_7 = arith.constant 0 : index
    %c0_8 = arith.constant 0 : index
    %10 = vector.load %arg5[%c0_7, %c0_8] : memref<512x17xbf16, #tpu.memory_space<vmem>>, vector<512x17xbf16>
    %cst_9 = arith.constant dense<0.000000e+00> : vector<8x17xf32>
    %11 = tpu.matmul %9, %10, %cst_9 {dimension_numbers = #tpu.dot_dimension_numbers<[1], [0], [0], [1], [0, 0, 1, 1], [], []>} : vector<8x512xbf16>, vector<512x17xbf16>, vector<8x17xf32> -> vector<8x17xf32>
    %c0_10 = arith.constant 0 : index
    %c0_11 = arith.constant 0 : index
    %12 = vector.load %arg6[%c0_10, %c0_11] : memref<1x17xf32, #tpu.memory_space<vmem>>, vector<1x17xf32>
    %13 = vector.broadcast %12 : vector<1x17xf32> to vector<8x17xf32>
    %14 = arith.addf %11, %13 : vector<8x17xf32>
    %15 = vector.extract_strided_slice %14 {offsets = [0, 0], sizes = [8, 8], strides = [1, 1]} : vector<8x17xf32> to vector<8x8xf32>
    %16 = vector.extract_strided_slice %14 {offsets = [0, 8], sizes = [8, 8], strides = [1, 1]} : vector<8x17xf32> to vector<8x8xf32>
    %17 = vector.extract_strided_slice %14 {offsets = [0, 16], sizes = [8, 1], strides = [1, 1]} : vector<8x17xf32> to vector<8x1xf32>
    %cst_12 = arith.constant 0.000000e+00 : f32
    %18 = vector.broadcast %cst_12 : f32 to vector<8x8xf32>
    %19 = arith.maximumf %16, %18 : vector<8x8xf32>
    %20 = math.absf %16 : vector<8x8xf32>
    %cst_13 = arith.constant 0.000000e+00 : f32
    %21 = vector.broadcast %cst_13 : f32 to vector<8x8xf32>
    %22 = arith.subf %21, %20 : vector<8x8xf32>
    %23 = math.exp %22 : vector<8x8xf32>
    %24 = math.log1p %23 : vector<8x8xf32>
    %25 = arith.addf %19, %24 : vector<8x8xf32>
    %26 = math.log %25 : vector<8x8xf32>
    %27 = tpu.reciprocal %25 : vector<8x8xf32> -> vector<8x8xf32>
    %28 = arith.subf %0, %15 : vector<8x8xf32>
    %29 = arith.mulf %28, %28 : vector<8x8xf32>
    %30 = arith.mulf %29, %27 : vector<8x8xf32>
    %cst_14 = arith.constant dense<0.000000e+00> : vector<8xf32>
    %31 = vector.multi_reduction <add>, %30, %cst_14 [1] : vector<8x8xf32> to vector<8xf32>
    %32 = vector.shape_cast %31 : vector<8xf32> to vector<8x1xf32>
    %cst_15 = arith.constant dense<0.000000e+00> : vector<8xf32>
    %33 = vector.multi_reduction <add>, %26, %cst_15 [1] : vector<8x8xf32> to vector<8xf32>
    %34 = vector.shape_cast %33 : vector<8xf32> to vector<8x1xf32>
    %35 = arith.addf %32, %34 : vector<8x1xf32>
    %cst_16 = arith.constant 8.000000e+00 : f32
    %cst_17 = arith.constant 1.83787704 : f32
    %36 = arith.mulf %cst_16, %cst_17 : f32
    %37 = vector.broadcast %36 : f32 to vector<8x1xf32>
    %38 = arith.addf %35, %37 : vector<8x1xf32>
    %cst_18 = arith.constant -5.000000e-01 : f32
    %39 = vector.broadcast %cst_18 : f32 to vector<8x1xf32>
    %40 = arith.mulf %39, %38 : vector<8x1xf32>
    %cst_19 = arith.constant 1.000000e+00 : f32
    %cst_20 = arith.constant 1.83787704 : f32
    %41 = arith.addf %cst_19, %cst_20 : f32
    %cst_21 = arith.constant 8.000000e+00 : f32
    %42 = arith.mulf %cst_21, %41 : f32
    %cst_22 = arith.constant 5.000000e-01 : f32
    %43 = arith.mulf %cst_22, %42 : f32
    %cst_23 = arith.constant 5.000000e-01 : f32
    %44 = vector.broadcast %cst_23 : f32 to vector<8x1xf32>
    %45 = arith.mulf %44, %34 : vector<8x1xf32>
    %46 = vector.broadcast %43 : f32 to vector<8x1xf32>
    %47 = arith.addf %46, %45 : vector<8x1xf32>
    %cst_24 = arith.constant 0.000000e+00 : f32
    %48 = vector.broadcast %cst_24 : f32 to vector<8x5xf32>
    %49 = tpu.concatenate %40, %17, %47, %48 in 1 : vector<8x1xf32>, vector<8x1xf32>, vector<8x1xf32>, vector<8x5xf32> -> vector<8x8xf32>
    %50 = tpu.transpose %49, [1, 0] : vector<8x8xf32> -> vector<8x8xf32>
    %c0_25 = arith.constant 0 : index
    %c0_26 = arith.constant 0 : index
    %51 = vector.load %arg7[%c0_25, %c0_26] : memref<8x8xf32, #tpu.memory_space<vmem>>, vector<8x8xf32>
    tpu.vector_store %arg7[%c0_25, %c0_26], %50 {strides = array<i32>} : memref<8x8xf32, #tpu.memory_space<vmem>>, vector<8x8xf32>,
    return
  }
  func.func @transform_0(%arg0: i32) -> (i32, i32) {
    %c0_i32 = arith.constant 0 : i32
    %c0_i32_0 = arith.constant 0 : i32
    return %arg0, %c0_i32 : i32, i32
  }
  func.func @transform_1(%arg0: i32) -> (i32, i32) {
    %c0_i32 = arith.constant 0 : i32
    %c0_i32_0 = arith.constant 0 : i32
    return %arg0, %c0_i32 : i32, i32
  }
  func.func @transform_2(%arg0: i32) -> (i32, i32) {
    %c0_i32 = arith.constant 0 : i32
    %c0_i32_0 = arith.constant 0 : i32
    %c0_i32_1 = arith.constant 0 : i32
    return %c0_i32, %c0_i32_0 : i32, i32
  }
  func.func @transform_3(%arg0: i32) -> (i32, i32) {
    %c0_i32 = arith.constant 0 : i32
    %c0_i32_0 = arith.constant 0 : i32
    %c0_i32_1 = arith.constant 0 : i32
    return %c0_i32, %c0_i32_0 : i32, i32
  }
  func.func @transform_4(%arg0: i32) -> (i32, i32) {
    %c0_i32 = arith.constant 0 : i32
    %c0_i32_0 = arith.constant 0 : i32
    %c0_i32_1 = arith.constant 0 : i32
    return %c0_i32, %c0_i32_0 : i32, i32
  }
  func.func @transform_5(%arg0: i32) -> (i32, i32) {
    %c0_i32 = arith.constant 0 : i32
    %c0_i32_0 = arith.constant 0 : i32
    %c0_i32_1 = arith.constant 0 : i32
    return %c0_i32, %c0_i32_0 : i32, i32
  }
  func.func @transform_6(%arg0: i32) -> (i32, i32) {
    %c0_i32 = arith.constant 0 : i32
    %c0_i32_0 = arith.constant 0 : i32
    return %c0_i32, %arg0 : i32, i32
  }
}

</mosaic_0001>

<llo_original>
// kernel: tpu_custom_call.1
$region0: #{tpu_custom_call.1}
  #allocation0 [shape = 'u32[]', space=smem, size = 0x4, offset = 0x4, fixed_abs, tag = 'smem constant byte address 0x4 - core index']
  #allocation1 [shape = 'u32[144,128]{1,0:T(1,128)}', space=vmem, size = 0x12000, scoped, tag = 'internal scratch']
  %s0 = inlined_call_operand.hbm [shape: f32[8,16], index: 0, kind: input, shape index: {}]
  %s1 = inlined_call_operand.hbm [shape: f32[8,8], index: 1, kind: input, shape index: {}]
  %s2 = inlined_call_operand.hbm [shape: bf16[16,512], index: 2, kind: input, shape index: {}]
  %s3 = inlined_call_operand.hbm [shape: f32[1,512], index: 3, kind: input, shape index: {}]
  %s4 = inlined_call_operand.hbm [shape: bf16[512,17], index: 4, kind: input, shape index: {}]
  %s5 = inlined_call_operand.hbm [shape: f32[1,17], index: 5, kind: input, shape index: {}]
  %s6 = inlined_call_operand.hbm [shape: f32[8,8], index: 6, kind: output, shape index: {}]
  %s7 = sld [smem:[#allocation0]]
  $region58: #{tpu_custom_call.1} parent=0
    _
  %s9 = ssub.s32 1, %s7
  %s10 = scalar_select 0, %s9, %s7
  $region1: #{tpu_custom_call.1} parent=0
    #allocation2 [shape = 'u8[4096]{0}', space=vmem, size = 0x1000, scoped, tag = 'input window, operand 0, single buffered']
    #allocation3 [shape = 's32[1]{0}', space=sflag, size = 0x4, scoped, tag = 'scoped memory for tpu_custom_call.1']
    #allocation4 [shape = 's32[1]{0}', space=sflag, size = 0x4, scoped, tag = 'scoped memory for tpu_custom_call.1']
    #allocation5 [shape = 'u8[4096]{0}', space=vmem, size = 0x1000, scoped, tag = 'input window, operand 1, single buffered']
    #allocation6 [shape = 's32[1]{0}', space=sflag, size = 0x4, scoped, tag = 'scoped memory for tpu_custom_call.1']
    #allocation7 [shape = 'u8[16384]{0}', space=vmem, size = 0x4000, scoped, tag = 'input window, operand 2, single buffered']
    #allocation8 [shape = 'u8[2048]{0}', space=vmem, size = 0x800, scoped, tag = 'input window, operand 3, single buffered']
    #allocation9 [shape = 's32[1]{0}', space=sflag, size = 0x4, scoped, tag = 'scoped memory for tpu_custom_call.1']
    #allocation10 [shape = 'u8[131072]{0}', space=vmem, size = 0x20000, scoped, tag = 'input window, operand 4, single buffered']
    #allocation11 [shape = 'u8[512]{0}', space=vmem, size = 0x400, scoped, tag = 'input window, operand 5, single buffered']
    #allocation12 [shape = 's32[1]{0}', space=sflag, size = 0x4, scoped, tag = 'scoped memory for tpu_custom_call.1']
    #allocation13 [shape = 'u8[4096]{0}', space=vmem, size = 0x1000, scoped, tag = 'output window, operand 0, single buffered']
    %11 = vsyncpa [#allocation3], 0
    %12 = vsyncpa [#allocation6], 0
    %13 = vsyncpa [#allocation9], 0
    %14 = vsyncpa [#allocation12], 0
    %15 = vsyncpa [#allocation4], 0
    // Predicated region
    $region2: #{tpu_custom_call.1} parent=1 // pred_check
      _
    $region3: #{tpu_custom_call.1} parent=1 // pred_check_branch
      %17 = sbr.rel (0) target = $region5
    $region4: #{tpu_custom_call.1} parent=1 // pred_region
      %s19 = ssub.s32 128, 128
      %20 = vsyncadd [#allocation3], %s19
      %s22 = sshll.u32 [#allocation2], 4
      %s23 = int_to_ptr.vmem [resolvable:$true] %s22
      %25 = dma.hbm_to_vmem [thread:$0]  %s0, 128, %s23, [#allocation3]
    $region5: #{tpu_custom_call.1} parent=1 // pred_fallthru
      _
    // Predicated region
    $region6: #{tpu_custom_call.1} parent=1 // pred_check
      _
    $region7: #{tpu_custom_call.1} parent=1 // pred_check_branch
      %27 = sbr.rel (0) target = $region9
    $region8: #{tpu_custom_call.1} parent=1 // pred_region
      %s29 = ssub.s32 128, 128
      %30 = vsyncadd [#allocation6], %s29
      %s32 = sshll.u32 [#allocation5], 4
      %s33 = int_to_ptr.vmem [resolvable:$true] %s32
      %35 = dma.hbm_to_vmem [thread:$0]  %s1, 128, %s33, [#allocation6]
    $region9: #{tpu_custom_call.1} parent=1 // pred_fallthru
      _
    // Predicated region
    $region10: #{tpu_custom_call.1} parent=1 // pred_check
      _
    $region11: #{tpu_custom_call.1} parent=1 // pred_check_branch
      %37 = sbr.rel (0) target = $region13
    $region12: #{tpu_custom_call.1} parent=1 // pred_region
      %s39 = ssub.s32 512, 512
      %40 = vsyncadd [#allocation6], %s39
      %s41 = sshll.u32 [#allocation7], 4
      %s42 = int_to_ptr.vmem [resolvable:$true] %s41
      %47 = dma.hbm_to_vmem [thread:$0]  %s2, 512, %s42, [#allocation6], 256, 256, 16
    $region13: #{tpu_custom_call.1} parent=1 // pred_fallthru
      _
    // Predicated region
    $region14: #{tpu_custom_call.1} parent=1 // pred_check
      _
    $region15: #{tpu_custom_call.1} parent=1 // pred_check_branch
      %49 = sbr.rel (0) target = $region17
    $region16: #{tpu_custom_call.1} parent=1 // pred_region
      %s51 = ssub.s32 64, 64
      %52 = vsyncadd [#allocation9], %s51
      %s54 = sshll.u32 [#allocation8], 4
      %s55 = int_to_ptr.vmem [resolvable:$true] %s54
      %57 = dma.hbm_to_vmem [thread:$0]  %s3, 64, %s55, [#allocation9]
    $region17: #{tpu_custom_call.1} parent=1 // pred_fallthru
      _
    // Predicated region
    $region18: #{tpu_custom_call.1} parent=1 // pred_check
      _
    $region19: #{tpu_custom_call.1} parent=1 // pred_check_branch
      %59 = sbr.rel (0) target = $region21
    $region20: #{tpu_custom_call.1} parent=1 // pred_region
      %s61 = ssub.s32 4096, 4096
      %62 = vsyncadd [#allocation9], %s61
      %s63 = sshll.u32 [#allocation10], 4
      %s64 = int_to_ptr.vmem [resolvable:$true] %s63
      %69 = dma.hbm_to_vmem [thread:$0]  %s4, 4096, %s64, [#allocation9], 64, 64, 4
    $region21: #{tpu_custom_call.1} parent=1 // pred_fallthru
      _
    // Predicated region
    $region22: #{tpu_custom_call.1} parent=1 // pred_check
      _
    $region23: #{tpu_custom_call.1} parent=1 // pred_check_branch
      %71 = sbr.rel (0) target = $region25
    $region24: #{tpu_custom_call.1} parent=1 // pred_region
      %s73 = ssub.s32 16, 16
      %74 = vsyncadd [#allocation12], %s73
      %s76 = sshll.u32 [#allocation11], 4
      %s77 = int_to_ptr.vmem [resolvable:$true] %s76
      %79 = dma.hbm_to_vmem [thread:$0]  %s5, 16, %s77, [#allocation12]
    $region25: #{tpu_custom_call.1} parent=1 // pred_fallthru
      _
    // Predicated region
    $region26: #{tpu_custom_call.1} parent=1 // pred_check
      _
    $region27: #{tpu_custom_call.1} parent=1 // pred_check_branch
      %81 = sbr.rel (0) target = $region29
    $region28: #{tpu_custom_call.1} parent=1 // pred_region
      %82 = dma.done [#allocation3], 128
    $region29: #{tpu_custom_call.1} parent=1 // pred_fallthru
      _
    // Predicated region
    $region30: #{tpu_custom_call.1} parent=1 // pred_check
      _
    $region31: #{tpu_custom_call.1} parent=1 // pred_check_branch
      %84 = sbr.rel (0) target = $region33
    $region32: #{tpu_custom_call.1} parent=1 // pred_region
      %85 = dma.done [#allocation6], 128
    $region33: #{tpu_custom_call.1} parent=1 // pred_fallthru
      _
    // Predicated region
    $region34: #{tpu_custom_call.1} parent=1 // pred_check
      _
    $region35: #{tpu_custom_call.1} parent=1 // pred_check_branch
      %87 = sbr.rel (0) target = $region37
    $region36: #{tpu_custom_call.1} parent=1 // pred_region
      %88 = dma.done [#allocation6], 512
    $region37: #{tpu_custom_call.1} parent=1 // pred_fallthru
      _
    // Predicated region
    $region38: #{tpu_custom_call.1} parent=1 // pred_check
      _
    $region39: #{tpu_custom_call.1} parent=1 // pred_check_branch
      %90 = sbr.rel (0) target = $region41
    $region40: #{tpu_custom_call.1} parent=1 // pred_region
      %91 = dma.done [#allocation9], 64
    $region41: #{tpu_custom_call.1} parent=1 // pred_fallthru
      _
    // Predicated region
    $region42: #{tpu_custom_call.1} parent=1 // pred_check
      _
    $region43: #{tpu_custom_call.1} parent=1 // pred_check_branch
      %93 = sbr.rel (0) target = $region45
    $region44: #{tpu_custom_call.1} parent=1 // pred_region
      %94 = dma.done [#allocation9], 4096
    $region45: #{tpu_custom_call.1} parent=1 // pred_fallthru
      _
    // Predicated region
    $region46: #{tpu_custom_call.1} parent=1 // pred_check
      _
    $region47: #{tpu_custom_call.1} parent=1 // pred_check_branch
      %96 = sbr.rel (0) target = $region49
    $region48: #{tpu_custom_call.1} parent=1 // pred_region
      %97 = dma.done [#allocation12], 16
    $region49: #{tpu_custom_call.1} parent=1 // pred_fallthru
      _
    %v99 = vld [vmem:[#allocation5] sm:$0xff]
    %v100 = vld [vmem:[#allocation2] sm:$0xff]
    %v101 = vpack.c.bf16 %v100, %v100
    %v102 = vld [vmem:[#allocation7] sm:$0xff]
    %v103 = vld [vmem:[#allocation7 + $0x8] sm:$0xff]
    %v104 = vld [vmem:[#allocation7 + $0x10] sm:$0xff]
    %v105 = vld [vmem:[#allocation7 + $0x18] sm:$0xff]
    %v106 = vld [vmem:[#allocation8] sm:$0xf]
    %v108 = vlaneseq
    %v109 = vshrl.u32 %v108, 7
    %v110 = vsub.s32 0, %v109
    %v111 = vrot.slane %v106, %v110
    %v112 = vlaneseq
    %v113 = vshrl.u32 %v112, 7
    %v114 = vsub.s32 1, %v113
    %v115 = vrot.slane %v106, %v114
    %v116 = vlaneseq
    %v117 = vshrl.u32 %v116, 7
    %v118 = vsub.s32 2, %v117
    %v119 = vrot.slane %v106, %v118
    %v120 = vlaneseq
    %v121 = vshrl.u32 %v120, 7
    %v122 = vsub.s32 3, %v121
    %v123 = vrot.slane %v106, %v122
    %v132 = vunpack.c.l.b16 %v102
    %v133 = vunpack.c.h.b16 %v102
    %v134 = vunpack.c.l.b16 %v103
    %v135 = vunpack.c.h.b16 %v103
    %v136 = vunpack.c.l.b16 %v104
    %v137 = vunpack.c.h.b16 %v104
    %v138 = vunpack.c.l.b16 %v105
    %v139 = vunpack.c.h.b16 %v105
    %v140 = vpack.c.b16 %v136, %v132
    %v141 = vpack.c.b16 %v137, %v133
    %v142 = vpack.c.b16 %v138, %v134
    %v143 = vpack.c.b16 %v139, %v135
    %vm148 = vcmask 130048
    %v150 = vsel %vm148, %v101, 0
    %152 = vmatprep.subr.bf16.mxu0 %v141
    %153 = vmatpush1.bf16.msra.mxu0 %v140
    %154 = vmatprep.subr.bf16.mxu0 0
    %155 = vmatpush1.bf16.msra.mxu0 0
    %156 = vmatprep.subr.bf16.mxu0 0
    %157 = vmatpush1.bf16.msra.mxu0 0
    %158 = vmatprep.subr.bf16.mxu0 0
    %159 = vmatpush1.bf16.msra.mxu0 0
    %160 = vmatprep.subr.bf16.mxu0 0
    %161 = vmatpush1.bf16.msra.mxu0 0
    %162 = vmatprep.subr.bf16.mxu0 0
    %163 = vmatpush1.bf16.msra.mxu0 0
    %164 = vmatprep.subr.bf16.mxu0 0
    %165 = vmatpush1.bf16.msra.mxu0 0
    %166 = vmatprep.subr.bf16.mxu0 0
    %167 = vmatpush1.bf16.msra.mxu0 0
    %168 = vmatprep.subr.bf16.mxu0 0
    %169 = vmatpush1.bf16.msra.mxu0 0
    %170 = vmatprep.subr.bf16.mxu0 0
    %171 = vmatpush1.bf16.msra.mxu0 0
    %172 = vmatprep.subr.bf16.mxu0 0
    %173 = vmatpush1.bf16.msra.mxu0 0
    %174 = vmatprep.subr.bf16.mxu0 0
    %175 = vmatpush1.bf16.msra.mxu0 0
    %176 = vmatprep.subr.bf16.mxu0 0
    %177 = vmatpush1.bf16.msra.mxu0 0
    %178 = vmatprep.subr.bf16.mxu0 0
    %179 = vmatpush1.bf16.msra.mxu0 0
    %180 = vmatprep.subr.bf16.mxu0 0
    %181 = vmatpush1.bf16.msra.mxu0 0
    %182 = vmatprep.subr.bf16.mxu0 0
    %183 = vmatpush1.bf16.msra.mxu0 0
    %184 = vmatprep.mubr.bf16.mxu0 0
    %185 = vmatmul.mubr.bf16.gmra.mrb[0].mxu0 %v150
    %v186 = vpop.f32.mrb[0].mxu0
    %v187 = vadd.f32 %v111, %v186
    %v188 = vpop.f32.mrb[0].mxu0
    %v189 = vadd.f32 %v115, %v188
    %v190 = vpop.f32.mrb[0].mxu0
    %v191 = vpop.f32.mrb[0].mxu0
    %192 = vdwg.mxu0
    %193 = vmatprep.subr.bf16.mxu0 %v143
    %194 = vmatpush1.bf16.msra.mxu0 %v142
    %195 = vmatprep.subr.bf16.mxu0 0
    %196 = vmatpush1.bf16.msra.mxu0 0
    %197 = vmatprep.subr.bf16.mxu0 0
    %198 = vmatpush1.bf16.msra.mxu0 0
    %199 = vmatprep.subr.bf16.mxu0 0
    %200 = vmatpush1.bf16.msra.mxu0 0
    %201 = vmatprep.subr.bf16.mxu0 0
    %202 = vmatpush1.bf16.msra.mxu0 0
    %203 = vmatprep.subr.bf16.mxu0 0
    %204 = vmatpush1.bf16.msra.mxu0 0
    %205 = vmatprep.subr.bf16.mxu0 0
    %206 = vmatpush1.bf16.msra.mxu0 0
    %207 = vmatprep.subr.bf16.mxu0 0
    %208 = vmatpush1.bf16.msra.mxu0 0
    %209 = vmatprep.subr.bf16.mxu0 0
    %210 = vmatpush1.bf16.msra.mxu0 0
    %211 = vmatprep.subr.bf16.mxu0 0
    %212 = vmatpush1.bf16.msra.mxu0 0
    %213 = vmatprep.subr.bf16.mxu0 0
    %214 = vmatpush1.bf16.msra.mxu0 0
    %215 = vmatprep.subr.bf16.mxu0 0
    %216 = vmatpush1.bf16.msra.mxu0 0
    %217 = vmatprep.subr.bf16.mxu0 0
    %218 = vmatpush1.bf16.msra.mxu0 0
    %219 = vmatprep.subr.bf16.mxu0 0
    %220 = vmatpush1.bf16.msra.mxu0 0
    %221 = vmatprep.subr.bf16.mxu0 0
    %222 = vmatpush1.bf16.msra.mxu0 0
    %223 = vmatprep.subr.bf16.mxu0 0
    %224 = vmatpush1.bf16.msra.mxu0 0
    %225 = vmatprep.mubr.bf16.mxu0 0
    %226 = vmatmul.mubr.bf16.gmra.mrb[0].mxu0 %v150
    %v227 = vpop.f32.mrb[0].mxu0
    %v228 = vadd.f32 %v119, %v227
    %v229 = vpop.f32.mrb[0].mxu0
    %v230 = vadd.f32 %v123, %v229
    %v231 = vpop.f32.mrb[0].mxu0
    %v232 = vpop.f32.mrb[0].mxu0
    %233 = vdwg.mxu0
    %v234 = vtanh.pop %v187
    %v235 = vtanh.pop %v189
    %v236 = vtanh.pop %v228
    %v237 = vtanh.pop %v230
    %v238 = vpack.c.bf16 %v234, %v234
    %v239 = vpack.c.bf16 %v235, %v235
    %v240 = vpack.c.bf16 %v236, %v236
    %v241 = vpack.c.bf16 %v237, %v237
    %v242 = vld [vmem:[#allocation10] sm:$0xf]
    %v243 = vld [vmem:[#allocation10 + $0x4] sm:$0xf]
    %v244 = vld [vmem:[#allocation10 + $0x8] sm:$0xf]
    %v245 = vld [vmem:[#allocation10 + $0xc] sm:$0xf]
    %v246 = vld [vmem:[#allocation10 + $0x10] sm:$0xf]
    %v247 = vld [vmem:[#allocation10 + $0x14] sm:$0xf]
    %v248 = vld [vmem:[#allocation10 + $0x18] sm:$0xf]
    %v249 = vld [vmem:[#allocation10 + $0x1c] sm:$0xf]
    %v250 = vld [vmem:[#allocation10 + $0x20] sm:$0xf]
    %v251 = vld [vmem:[#allocation10 + $0x24] sm:$0xf]
    %v252 = vld [vmem:[#allocation10 + $0x28] sm:$0xf]
    %v253 = vld [vmem:[#allocation10 + $0x2c] sm:$0xf]
    %v254 = vld [vmem:[#allocation10 + $0x30] sm:$0xf]
    %v255 = vld [vmem:[#allocation10 + $0x34] sm:$0xf]
    %v256 = vld [vmem:[#allocation10 + $0x38] sm:$0xf]
    %v257 = vld [vmem:[#allocation10 + $0x3c] sm:$0xf]
    %v258 = vld [vmem:[#allocation10 + $0x40] sm:$0xf]
    %v259 = vld [vmem:[#allocation10 + $0x44] sm:$0xf]
    %v260 = vld [vmem:[#allocation10 + $0x48] sm:$0xf]
    %v261 = vld [vmem:[#allocation10 + $0x4c] sm:$0xf]
    %v262 = vld [vmem:[#allocation10 + $0x50] sm:$0xf]
    %v263 = vld [vmem:[#allocation10 + $0x54] sm:$0xf]
    %v264 = vld [vmem:[#allocation10 + $0x58] sm:$0xf]
    %v265 = vld [vmem:[#allocation10 + $0x5c] sm:$0xf]
    %v266 = vld [vmem:[#allocation10 + $0x60] sm:$0xf]
    %v267 = vld [vmem:[#allocation10 + $0x64] sm:$0xf]
    %v268 = vld [vmem:[#allocation10 + $0x68] sm:$0xf]
    %v269 = vld [vmem:[#allocation10 + $0x6c] sm:$0xf]
    %v270 = vld [vmem:[#allocation10 + $0x70] sm:$0xf]
    %v271 = vld [vmem:[#allocation10 + $0x74] sm:$0xf]
    %v272 = vld [vmem:[#allocation10 + $0x78] sm:$0xf]
    %v273 = vld [vmem:[#allocation10 + $0x7c] sm:$0xf]
    %v274 = vld [vmem:[#allocation10 + $0x80] sm:$0xf]
    %v275 = vld [vmem:[#allocation10 + $0x84] sm:$0xf]
    %v276 = vld [vmem:[#allocation10 + $0x88] sm:$0xf]
    %v277 = vld [vmem:[#allocation10 + $0x8c] sm:$0xf]
    %v278 = vld [vmem:[#allocation10 + $0x90] sm:$0xf]
    %v279 = vld [vmem:[#allocation10 + $0x94] sm:$0xf]
    %v280 = vld [vmem:[#allocation10 + $0x98] sm:$0xf]
    %v281 = vld [vmem:[#allocation10 + $0x9c] sm:$0xf]
    %v282 = vld [vmem:[#allocation10 + $0xa0] sm:$0xf]
    %v283 = vld [vmem:[#allocation10 + $0xa4] sm:$0xf]
    %v284 = vld [vmem:[#allocation10 + $0xa8] sm:$0xf]
    %v285 = vld [vmem:[#allocation10 + $0xac] sm:$0xf]
    %v286 = vld [vmem:[#allocation10 + $0xb0] sm:$0xf]
    %v287 = vld [vmem:[#allocation10 + $0xb4] sm:$0xf]
    %v288 = vld [vmem:[#allocation10 + $0xb8] sm:$0xf]
    %v289 = vld [vmem:[#allocation10 + $0xbc] sm:$0xf]
    %v290 = vld [vmem:[#allocation10 + $0xc0] sm:$0xf]
    %v291 = vld [vmem:[#allocation10 + $0xc4] sm:$0xf]
    %v292 = vld [vmem:[#allocation10 + $0xc8] sm:$0xf]
    %v293 = vld [vmem:[#allocation10 + $0xcc] sm:$0xf]
    %v294 = vld [vmem:[#allocation10 + $0xd0] sm:$0xf]
    %v295 = vld [vmem:[#allocation10 + $0xd4] sm:$0xf]
    %v296 = vld [vmem:[#allocation10 + $0xd8] sm:$0xf]
    %v297 = vld [vmem:[#allocation10 + $0xdc] sm:$0xf]
    %v298 = vld [vmem:[#allocation10 + $0xe0] sm:$0xf]
    %v299 = vld [vmem:[#allocation10 + $0xe4] sm:$0xf]
    %v300 = vld [vmem:[#allocation10 + $0xe8] sm:$0xf]
    %v301 = vld [vmem:[#allocation10 + $0xec] sm:$0xf]
    %v302 = vld [vmem:[#allocation10 + $0xf0] sm:$0xf]
    %v303 = vld [vmem:[#allocation10 + $0xf4] sm:$0xf]
    %v304 = vld [vmem:[#allocation10 + $0xf8] sm:$0xf]
    %v305 = vld [vmem:[#allocation10 + $0xfc] sm:$0xf]
    %v306 = vld [vmem:[#allocation11] sm:$0x1]
    %v308 = vlaneseq
    %v309 = vshrl.u32 %v308, 7
    %v310 = vsub.s32 0, %v309
    %v311 = vrot.slane %v306, %v310
    %v377 = vunpack.c.l.b16 %v242
    %v378 = vunpack.c.l.b16 %v243
    %v379 = vunpack.c.l.b16 %v244
    %v380 = vunpack.c.l.b16 %v245
    %v381 = vunpack.c.l.b16 %v246
    %v382 = vunpack.c.l.b16 %v247
    %v383 = vunpack.c.l.b16 %v248
    %v384 = vunpack.c.l.b16 %v249
    %v385 = vunpack.c.l.b16 %v250
    %v386 = vunpack.c.l.b16 %v251
    %v387 = vunpack.c.l.b16 %v252
    %v388 = vunpack.c.l.b16 %v253
    %v389 = vunpack.c.l.b16 %v254
    %v390 = vunpack.c.l.b16 %v255
    %v391 = vunpack.c.l.b16 %v256
    %v392 = vunpack.c.l.b16 %v257
    %v393 = vunpack.c.l.b16 %v258
    %v394 = vunpack.c.l.b16 %v259
    %v395 = vunpack.c.l.b16 %v260
    %v396 = vunpack.c.l.b16 %v261
    %v397 = vunpack.c.l.b16 %v262
    %v398 = vunpack.c.l.b16 %v263
    %v399 = vunpack.c.l.b16 %v264
    %v400 = vunpack.c.l.b16 %v265
    %v401 = vunpack.c.l.b16 %v266
    %v402 = vunpack.c.l.b16 %v267
    %v403 = vunpack.c.l.b16 %v268
    %v404 = vunpack.c.l.b16 %v269
    %v405 = vunpack.c.l.b16 %v270
    %v406 = vunpack.c.l.b16 %v271
    %v407 = vunpack.c.l.b16 %v272
    %v408 = vunpack.c.l.b16 %v273
    %v409 = vunpack.c.l.b16 %v274
    %v410 = vunpack.c.l.b16 %v275
    %v411 = vunpack.c.l.b16 %v276
    %v412 = vunpack.c.l.b16 %v277
    %v413 = vunpack.c.l.b16 %v278
    %v414 = vunpack.c.l.b16 %v279
    %v415 = vunpack.c.l.b16 %v280
    %v416 = vunpack.c.l.b16 %v281
    %v417 = vunpack.c.l.b16 %v282
    %v418 = vunpack.c.l.b16 %v283
    %v419 = vunpack.c.l.b16 %v284
    %v420 = vunpack.c.l.b16 %v285
    %v421 = vunpack.c.l.b16 %v286
    %v422 = vunpack.c.l.b16 %v287
    %v423 = vunpack.c.l.b16 %v288
    %v424 = vunpack.c.l.b16 %v289
    %v425 = vunpack.c.l.b16 %v290
    %v426 = vunpack.c.l.b16 %v291
    %v427 = vunpack.c.l.b16 %v292
    %v428 = vunpack.c.l.b16 %v293
    %v429 = vunpack.c.l.b16 %v294
    %v430 = vunpack.c.l.b16 %v295
    %v431 = vunpack.c.l.b16 %v296
    %v432 = vunpack.c.l.b16 %v297
    %v433 = vunpack.c.l.b16 %v298
    %v434 = vunpack.c.l.b16 %v299
    %v435 = vunpack.c.l.b16 %v300
    %v436 = vunpack.c.l.b16 %v301
    %v437 = vunpack.c.l.b16 %v302
    %v438 = vunpack.c.l.b16 %v303
    %v439 = vunpack.c.l.b16 %v304
    %v440 = vunpack.c.l.b16 %v305
    %v441 = vpack.c.b16 %v378, %v377
    %v442 = vpack.c.b16 %v380, %v379
    %v443 = vpack.c.b16 %v382, %v381
    %v444 = vpack.c.b16 %v384, %v383
    %v445 = vpack.c.b16 %v386, %v385
    %v446 = vpack.c.b16 %v388, %v387
    %v447 = vpack.c.b16 %v390, %v389
    %v448 = vpack.c.b16 %v392, %v391
    %v449 = vpack.c.b16 %v394, %v393
    %v450 = vpack.c.b16 %v396, %v395
    %v451 = vpack.c.b16 %v398, %v397
    %v452 = vpack.c.b16 %v400, %v399
    %v453 = vpack.c.b16 %v402, %v401
    %v454 = vpack.c.b16 %v404, %v403
    %v455 = vpack.c.b16 %v406, %v405
    %v456 = vpack.c.b16 %v408, %v407
    %v457 = vpack.c.b16 %v410, %v409
    %v458 = vpack.c.b16 %v412, %v411
    %v459 = vpack.c.b16 %v414, %v413
    %v460 = vpack.c.b16 %v416, %v415
    %v461 = vpack.c.b16 %v418, %v417
    %v462 = vpack.c.b16 %v420, %v419
    %v463 = vpack.c.b16 %v422, %v421
    %v464 = vpack.c.b16 %v424, %v423
    %v465 = vpack.c.b16 %v426, %v425
    %v466 = vpack.c.b16 %v428, %v427
    %v467 = vpack.c.b16 %v430, %v429
    %v468 = vpack.c.b16 %v432, %v431
    %v469 = vpack.c.b16 %v434, %v433
    %v470 = vpack.c.b16 %v436, %v435
    %v471 = vpack.c.b16 %v438, %v437
    %v472 = vpack.c.b16 %v440, %v439
    %505 = vmatprep.subr.bf16.mxu0 0
    %506 = vmatpush1.bf16.msra.mxu0 %v441
    %507 = vmatprep.subr.bf16.mxu0 0
    %508 = vmatpush1.bf16.msra.mxu0 %v442
    %509 = vmatprep.subr.bf16.mxu0 0
    %510 = vmatpush1.bf16.msra.mxu0 %v443
    %511 = vmatprep.subr.bf16.mxu0 0
    %512 = vmatpush1.bf16.msra.mxu0 %v444
    %513 = vmatprep.subr.bf16.mxu0 0
    %514 = vmatpush1.bf16.msra.mxu0 %v445
    %515 = vmatprep.subr.bf16.mxu0 0
    %516 = vmatpush1.bf16.msra.mxu0 %v446
    %517 = vmatprep.subr.bf16.mxu0 0
    %518 = vmatpush1.bf16.msra.mxu0 %v447
    %519 = vmatprep.subr.bf16.mxu0 0
    %520 = vmatpush1.bf16.msra.mxu0 %v448
    %521 = vmatprep.subr.bf16.mxu0 0
    %522 = vmatpush1.bf16.msra.mxu0 %v449
    %523 = vmatprep.subr.bf16.mxu0 0
    %524 = vmatpush1.bf16.msra.mxu0 %v450
    %525 = vmatprep.subr.bf16.mxu0 0
    %526 = vmatpush1.bf16.msra.mxu0 %v451
    %527 = vmatprep.subr.bf16.mxu0 0
    %528 = vmatpush1.bf16.msra.mxu0 %v452
    %529 = vmatprep.subr.bf16.mxu0 0
    %530 = vmatpush1.bf16.msra.mxu0 %v453
    %531 = vmatprep.subr.bf16.mxu0 0
    %532 = vmatpush1.bf16.msra.mxu0 %v454
    %533 = vmatprep.subr.bf16.mxu0 0
    %534 = vmatpush1.bf16.msra.mxu0 %v455
    %535 = vmatprep.subr.bf16.mxu0 0
    %536 = vmatpush1.bf16.msra.mxu0 %v456
    %537 = vmatprep.mubr.bf16.mxu0 %v239
    %538 = vmatmul.mubr.bf16.gmra.mrb[0].mxu0 %v238
    %v539 = vpop.f32.mrb[0].mxu0
    %v540 = vadd.f32 %v311, %v539
    %v541 = vpop.f32.mrb[0].mxu0
    %v542 = vpop.f32.mrb[0].mxu0
    %v543 = vpop.f32.mrb[0].mxu0
    %544 = vdwg.mxu0
    %545 = vmatprep.subr.bf16.mxu0 0
    %546 = vmatpush1.bf16.msra.mxu0 %v457
    %547 = vmatprep.subr.bf16.mxu0 0
    %548 = vmatpush1.bf16.msra.mxu0 %v458
    %549 = vmatprep.subr.bf16.mxu0 0
    %550 = vmatpush1.bf16.msra.mxu0 %v459
    %551 = vmatprep.subr.bf16.mxu0 0
    %552 = vmatpush1.bf16.msra.mxu0 %v460
    %553 = vmatprep.subr.bf16.mxu0 0
    %554 = vmatpush1.bf16.msra.mxu0 %v461
    %555 = vmatprep.subr.bf16.mxu0 0
    %556 = vmatpush1.bf16.msra.mxu0 %v462
    %557 = vmatprep.subr.bf16.mxu0 0
    %558 = vmatpush1.bf16.msra.mxu0 %v463
    %559 = vmatprep.subr.bf16.mxu0 0
    %560 = vmatpush1.bf16.msra.mxu0 %v464
    %561 = vmatprep.subr.bf16.mxu0 0
    %562 = vmatpush1.bf16.msra.mxu0 %v465
    %563 = vmatprep.subr.bf16.mxu0 0
    %564 = vmatpush1.bf16.msra.mxu0 %v466
    %565 = vmatprep.subr.bf16.mxu0 0
    %566 = vmatpush1.bf16.msra.mxu0 %v467
    %567 = vmatprep.subr.bf16.mxu0 0
    %568 = vmatpush1.bf16.msra.mxu0 %v468
    %569 = vmatprep.subr.bf16.mxu0 0
    %570 = vmatpush1.bf16.msra.mxu0 %v469
    %571 = vmatprep.subr.bf16.mxu0 0
    %572 = vmatpush1.bf16.msra.mxu0 %v470
    %573 = vmatprep.subr.bf16.mxu0 0
    %574 = vmatpush1.bf16.msra.mxu0 %v471
    %575 = vmatprep.subr.bf16.mxu0 0
    %576 = vmatpush1.bf16.msra.mxu0 %v472
    %577 = vmatprep.mubr.bf16.mxu0 %v241
    %578 = vmatmul.mubr.bf16.gmra.mrb[0].mxu0 %v240
    %v579 = vpop.f32.mrb[0].mxu0
    %v580 = vadd.f32 %v540, %v579
    %v581 = vpop.f32.mrb[0].mxu0
    %v582 = vpop.f32.mrb[0].mxu0
    %v583 = vpop.f32.mrb[0].mxu0
    %584 = vdwg.mxu0
    %v585 = vmax.f32 %v580, 0.0
    %v586 = vand.u32 2147483647, %v580
    %v587 = vsub.f32 0.0, %v586
    %v588 = vmul.f32 %v587, 1.442695
    %v589 = vpow.pop %v588
    %v590 = vadd.f32 %v589, 1.0
    %v591 = vlog2.pop %v590
    %v592 = vmul.f32 %v591, 0.6931472
    %v593 = vmul.f32 -0.5, %v589
    %v594 = vadd.f32 %v593, 1.0
    %v595 = vmul.f32 %v594, %v589
    %v596 = vand.u32 2147483647, %v589
    %vm597 = vcmp.lt.f32.partialorder %v596, 0.0004427343
    %v598 = vsel %vm597, %v595, %v592
    %v599 = vadd.f32 %v585, %v598
    %v600 = vlog2.pop %v599
    %v601 = vmul.f32 %v600, 0.6931472
    %v602 = vrcp.pop %v599
    %v603 = vsub.f32 %v99, %v580
    %v604 = vmul.f32 %v603, %v603
    %606 = vrot.lane.b32.xlu0 %v602, 120
    %v607 = vpop.permute.xlu0 %606
    %v609 = vmul.f32 %v604, %v607
    %vm610 = vcmask 64512
    %v611 = vsel %vm610, %v609, 0.0
    %612 = vadd.xlane.f32.xlu0 %v611
    %v613 = vpop.xlane.xlu0 %612
    %615 = vrot.lane.b32.xlu0 %v601, 120
    %v616 = vpop.permute.xlu0 %615
    %v618 = vsel %vm610, %v616, 0.0
    %619 = vadd.xlane.f32.xlu0 %v618
    %v620 = vpop.xlane.xlu0 %619
    %v621 = vadd.f32 %v613, %v620
    %v622 = vadd.f32 %v621, 14.703016
    %v623 = vmul.f32 %v622, -0.5
    %v624 = vmul.f32 %v620, 0.5
    %v625 = vadd.f32 %v624, 11.351508
    %627 = vrot.lane.b32.xlu0 %v580, 113
    %v628 = vpop.permute.xlu0 %627
    %vm630 = vcmask 7168
    %v631 = vsel %vm630, %v623, %v628
    %vm632 = vcmask 15360
    %v633 = vsel %vm632, %v631, %v625
    %vm634 = vcmask 23552
    %v635 = vsel %vm634, %v633, 0.0
    %636 = vxpose.xlu0.b32.start [1/16] %v635, 128
    %637 = vxpose.xlu0.b32.cont [2/16] 0.0, 128
    %638 = vxpose.xlu0.b32.cont [3/16] 0.0, 128
    %639 = vxpose.xlu0.b32.cont [4/16] 0.0, 128
    %640 = vxpose.xlu0.b32.cont [5/16] 0.0, 128
    %641 = vxpose.xlu0.b32.cont [6/16] 0.0, 128
    %642 = vxpose.xlu0.b32.cont [7/16] 0.0, 128
    %643 = vxpose.xlu0.b32.cont [8/16] 0.0, 128
    %644 = vxpose.xlu0.b32.cont [9/16] 0.0, 128
    %645 = vxpose.xlu0.b32.cont [10/16] 0.0, 128
    %646 = vxpose.xlu0.b32.cont [11/16] 0.0, 128
    %647 = vxpose.xlu0.b32.cont [12/16] 0.0, 128
    %648 = vxpose.xlu0.b32.cont [13/16] 0.0, 128
    %649 = vxpose.xlu0.b32.cont [14/16] 0.0, 128
    %650 = vxpose.xlu0.b32.cont [15/16] 0.0, 128
    %651 = vxpose.xlu0.b32.end [16/16] 0.0, 128
    %v652 = vpop.trf.xlu0
    %v653 = vpop.trf.xlu0
    %v654 = vpop.trf.xlu0
    %v655 = vpop.trf.xlu0
    %v656 = vpop.trf.xlu0
    %v657 = vpop.trf.xlu0
    %v658 = vpop.trf.xlu0
    %v659 = vpop.trf.xlu0
    %v660 = vpop.trf.xlu0
    %v661 = vpop.trf.xlu0
    %v662 = vpop.trf.xlu0
    %v663 = vpop.trf.xlu0
    %v664 = vpop.trf.xlu0
    %v665 = vpop.trf.xlu0
    %v666 = vpop.trf.xlu0
    %v667 = vpop.trf.xlu0
    %668 = vst.msk [vmem:[#allocation13] sm:$0xff] %vm610, %v652
    // Predicated region
    $region50: #{tpu_custom_call.1} parent=1 // pred_check
      _
    $region51: #{tpu_custom_call.1} parent=1 // pred_check_branch
      %670 = sbr.rel (0) target = $region53
    $region52: #{tpu_custom_call.1} parent=1 // pred_region
      %s672 = ssub.s32 128, 128
      %673 = vsyncadd [#allocation4], %s672
      %s675 = sshll.u32 [#allocation13], 4
      %s676 = int_to_ptr.vmem [resolvable:$true] %s675
      %678 = dma.vmem_to_hbm [thread:$0]  %s676, 128, %s6, [#allocation4]
    $region53: #{tpu_custom_call.1} parent=1 // pred_fallthru
      _
    // Predicated region
    $region54: #{tpu_custom_call.1} parent=1 // pred_check
      _
    $region55: #{tpu_custom_call.1} parent=1 // pred_check_branch
      %680 = sbr.rel (0) target = $region57
    $region56: #{tpu_custom_call.1} parent=1 // pred_region
      %681 = dma.done [#allocation4], 128
    $region57: #{tpu_custom_call.1} parent=1 // pred_fallthru
      _
    %682 = vsyncpa [#allocation3], 1
    %683 = vsyncpa [#allocation6], 1
    %684 = vsyncpa [#allocation9], 1
    %685 = vsyncpa [#allocation12], 1
    %686 = vsyncpa [#allocation4], 1

</llo_original>
